<compile_context>
chip_gen: v7x
topology: tpu7x:2x2x1
jax: 0.10.0
libtpu: 0.0.40
codegen_flags: <defaults>
</compile_context>

<pallas_src>
import math
import jax
import jax.numpy as jnp
from jax.experimental import pallas as pl
from jax.experimental.pallas import tpu as pltpu


def _encoder_kernel(x_ref, w1_ref, b1_ref, wms_ref, bms_ref, eps_ref, z_ref, h_acc):
    """Encoder hidden layer (K-reduction over item tiles) + fused heads + reparam."""
    k = pl.program_id(1)

    @pl.when(k == 0)
    def _():
        h_acc[...] = jnp.zeros_like(h_acc)

    # Stream one (TKN, H) slice of W1 per grid step: bf16 MXU inputs, f32 accumulate.
    h_acc[...] += jnp.dot(x_ref[...], w1_ref[...], preferred_element_type=jnp.float32)

    @pl.when(k == pl.num_programs(1) - 1)
    def _():
        h = jnp.maximum(h_acc[...] + b1_ref[...], 0.0)            # bias + ReLU (f32)
        # Fused mu|logvar head: single [TB,H] x [H,2L] matmul fills the MXU lanes.
        y = jnp.dot(h.astype(jnp.bfloat16), wms_ref[...],
                    preferred_element_type=jnp.float32) + bms_ref[...]
        L = eps_ref.shape[-1]
        mu = y[:, :L]
        log_var = y[:, L:]
        std = jnp.exp(0.5 * log_var)                              # EUP transcendental
        z_ref[...] = (mu + std * eps_ref[...]).astype(z_ref.dtype)


def _decoder_kernel(z_ref, wd_ref, bd_ref, out_ref):
    """Decoder: one lane-dense output tile of sigmoid(z @ W_dec + b_dec)."""
    logits = jnp.dot(z_ref[...], wd_ref[...],
                     preferred_element_type=jnp.float32) + bd_ref[...]
    if out_ref.dtype == jnp.bfloat16:
        # bf16 sigmoid + bf16 store: relieves EUP / store-slot pressure on v6e/v7x/v5e.
        out_ref[...] = jax.nn.sigmoid(logits.astype(jnp.bfloat16))
    else:
        out_ref[...] = jax.nn.sigmoid(logits).astype(out_ref.dtype)


def _nbytes(shape, dtype):
    return math.prod(shape) * jnp.dtype(dtype).itemsize


def _vmem_limit(requested_bytes):
    """Clamp a requested VMEM budget against physical capacity (64 MiB on v7x)."""
    try:
        cap = int(pltpu.get_tpu_info().vmem_capacity_bytes)
    except Exception:  # fall back to the smallest generation's capacity
        cap = 64 << 20
    return int(min(requested_bytes, int(cap * 7 / 8)))


def prepare_params(params):
    """One-time parameter prep (outside jit): bf16 weights, fused mu|sigma head."""
    return {
        "w1": params["w1"].astype(jnp.bfloat16),
        "b1": params["b1"],
        "w_ms": jnp.concatenate([params["w_mu"], params["w_sig"]], axis=1).astype(jnp.bfloat16),
        "b_ms": jnp.concatenate([params["b_mu"], params["b_sig"]], axis=1),
        "w_dec": params["w_dec"].astype(jnp.bfloat16),
        "b_dec": params["b_dec"],
    }


def cvae_forward(x, prepared, eps, *, tb=None, tkn=1024, tn=512,
                 out_dtype=jnp.float32):
    """x: [B, N] (bf16 preferred), eps: [B, L] f32, prepared: output of prepare_params."""
    B, N = x.shape
    H = prepared["w1"].shape[1]
    L = prepared["w_dec"].shape[0]

    # Fill MXU rows when batch allows; >=2 batch tiles gives v7x both TensorCores work.
    tb = min(B, 128) if tb is None else min(tb, B)
    tkn = min(tkn, N)
    tn = min(tn, N)
    assert B % tb == 0 and N % tkn == 0 and N % tn == 0
    assert H % 128 == 0 and L % 128 == 0 and tn % 128 == 0

    # bf16 x (exact for 0/1 implicit feedback): halves x DMA + VMEM, no in-kernel cast.
    x = x.astype(jnp.bfloat16)

    w1, b1 = prepared["w1"], prepared["b1"]
    w_ms, b_ms = prepared["w_ms"], prepared["b_ms"]
    w_dec, b_dec = prepared["w_dec"], prepared["b_dec"]

    # ---- Phase 1: encoder -> z (bf16, consumed only by the bf16 decoder matmul) ----
    enc_block_bytes = (
        _nbytes((tb, tkn), jnp.bfloat16) + _nbytes((tkn, H), jnp.bfloat16)
        + _nbytes((1, H), jnp.float32) + _nbytes((H, 2 * L), jnp.bfloat16)
        + _nbytes((1, 2 * L), jnp.float32) + _nbytes((tb, L), jnp.float32)   # eps
        + _nbytes((tb, L), jnp.bfloat16)                                     # z out
    )
    # Pallas double-buffers every blocked operand; add scratch + headroom, clamp to HW.
    enc_vmem = _vmem_limit(2 * enc_block_bytes + _nbytes((tb, H), jnp.float32) + (8 << 20))

    z = pl.pallas_call(
        _encoder_kernel,
        out_shape=jax.ShapeDtypeStruct((B, L), jnp.bfloat16),
        grid=(B // tb, N // tkn),
        in_specs=[
            pl.BlockSpec((tb, tkn), lambda b, k: (b, k)),        # x (batch, K tile)
            pl.BlockSpec((tkn, H), lambda b, k: (k, 0)),         # W1 streamed over K
            pl.BlockSpec((1, H), lambda b, k: (0, 0)),           # b1 (resident)
            pl.BlockSpec((H, 2 * L), lambda b, k: (0, 0)),       # [W_mu | W_sig]
            pl.BlockSpec((1, 2 * L), lambda b, k: (0, 0)),       # [b_mu | b_sig]
            pl.BlockSpec((tb, L), lambda b, k: (b, 0)),          # eps
        ],
        out_specs=pl.BlockSpec((tb, L), lambda b, k: (b, 0)),
        scratch_shapes=[pltpu.VMEM((tb, H), jnp.float32)],
        compiler_params=pltpu.CompilerParams(
            dimension_semantics=("parallel", "arbitrary"),       # reduction axis last
            vmem_limit_bytes=enc_vmem,
        ),
    )(x, w1, b1, w_ms, b_ms, eps)

    # ---- Phase 2: decoder -----------------------------------------------------------
    dec_block_bytes = (
        _nbytes((tb, L), jnp.bfloat16) + _nbytes((L, tn), jnp.bfloat16)
        + _nbytes((1, tn), jnp.float32) + _nbytes((tb, tn), out_dtype)
    )
    dec_vmem = _vmem_limit(2 * dec_block_bytes + (8 << 20))

    # Item-tile axis outer: each (L, tn) W_dec tile is DMA'd once; the tiny z tile
    # is the operand revisited across batch tiles.
    out = pl.pallas_call(
        _decoder_kernel,
        out_shape=jax.ShapeDtypeStruct((B, N), out_dtype),
        grid=(N // tn, B // tb),
        in_specs=[
            pl.BlockSpec((tb, L), lambda n, b: (b, 0)),          # z
            pl.BlockSpec((L, tn), lambda n, b: (0, n)),          # W_dec output tile
            pl.BlockSpec((1, tn), lambda n, b: (0, n)),          # b_dec tile
        ],
        out_specs=pl.BlockSpec((tb, tn), lambda n, b: (b, n)),   # lane-dense output
        compiler_params=pltpu.CompilerParams(
            dimension_semantics=("parallel", "parallel"),        # megacore-friendly
            vmem_limit_bytes=dec_vmem,
        ),
    )(z, w_dec, b_dec)

    return out


def init_params(key, n_item_ratings, mu_sigma_dim, latent_space_dim):
    """Deterministic PyTorch-Linear-style init: U(-1/sqrt(fan_in), 1/sqrt(fan_in))."""
    ks = jax.random.split(key, 8)

    def lin(kw, kb, fan_in, fan_out):
        bound = 1.0 / math.sqrt(fan_in)
        w = jax.random.uniform(kw, (fan_in, fan_out), jnp.float32, -bound, bound)
        b = jax.random.uniform(kb, (1, fan_out), jnp.float32, -bound, bound)
        return w, b

    w1, b1 = lin(ks[0], ks[1], n_item_ratings, mu_sigma_dim)
    w_mu, b_mu = lin(ks[2], ks[3], mu_sigma_dim, latent_space_dim)
    w_sig, b_sig = lin(ks[4], ks[5], mu_sigma_dim, latent_space_dim)
    w_dec, b_dec = lin(ks[6], ks[7], latent_space_dim, n_item_ratings)

    return {
        "w1": w1, "b1": b1,
        "w_mu": w_mu, "b_mu": b_mu,
        "w_sig": w_sig, "b_sig": b_sig,
        "w_dec": w_dec, "b_dec": b_dec,
    }


def reference_forward(x, prepared, eps):
    """Pure-JAX reference matching the kernel's bf16-matmul / f32-accumulate recipe."""
    xb = x.astype(jnp.bfloat16)
    h = jnp.maximum(
        jnp.dot(xb, prepared["w1"], preferred_element_type=jnp.float32)
        + prepared["b1"], 0.0)
    y = (jnp.dot(h.astype(jnp.bfloat16), prepared["w_ms"],
                 preferred_element_type=jnp.float32) + prepared["b_ms"])
    L = eps.shape[-1]
    mu, log_var = y[:, :L], y[:, L:]
    z = (mu + jnp.exp(0.5 * log_var) * eps).astype(jnp.bfloat16)
    logits = (jnp.dot(z, prepared["w_dec"], preferred_element_type=jnp.float32)
              + prepared["b_dec"])
    return jax.nn.sigmoid(logits)


if __name__ == "__main__":
    # Small, 128-aligned shapes consistent with the module (defaults scaled down).
    batch = 8
    n_item_ratings = 512
    mu_sigma_dim = 256
    latent_space_dim = 128

    key = jax.random.PRNGKey(0)
    k_params, k_x, k_eps = jax.random.split(key, 3)

    params = init_params(k_params, n_item_ratings, mu_sigma_dim, latent_space_dim)
    prepared = prepare_params(params)       # one-time bf16 cast + head fusion (outside jit)

    # Implicit-feedback-style input (binary item interactions) -> exact in bf16.
    x = (jax.random.uniform(k_x, (batch, n_item_ratings)) < 0.1).astype(jnp.bfloat16)
    eps = jax.random.normal(k_eps, (batch, latent_space_dim), jnp.float32)

    fwd = jax.jit(cvae_forward)
    out = jax.block_until_ready(fwd(x, prepared, eps))

    ref = reference_forward(x, prepared, eps)
    assert out.shape == (batch, n_item_ratings)
    assert out.dtype == jnp.float32
    assert jnp.allclose(out, ref, atol=2e-3, rtol=2e-3), "mismatch vs bf16-matched reference"

    # Loose sanity check vs full-f32 math (bf16 matmuls bound the error on sigmoid outputs).
    xf = x.astype(jnp.float32)
    h = jnp.maximum(xf @ params["w1"] + params["b1"], 0.0)
    mu = h @ params["w_mu"] + params["b_mu"]
    lv = h @ params["w_sig"] + params["b_sig"]
    ref_f32 = jax.nn.sigmoid((mu + jnp.exp(0.5 * lv) * eps) @ params["w_dec"] + params["b_dec"])
    assert jnp.max(jnp.abs(out - ref_f32)) < 3e-2, "drifted too far from f32 reference"

    print("KERNEL_OK")
</pallas_src>

<mosaic_0001>
module attributes {stable_mosaic.version = 11 : i64} {
  func.func @_decoder_kernel(%arg0: i32, %arg1: i32, %arg2: memref<8x128xbf16, #tpu.memory_space<vmem>>, %arg3: memref<128x512xbf16, #tpu.memory_space<vmem>>, %arg4: memref<1x512xf32, #tpu.memory_space<vmem>>, %arg5: memref<8x512xf32, #tpu.memory_space<vmem>>) attributes {dimension_semantics = [#tpu.dimension_semantics<parallel>, #tpu.dimension_semantics<parallel>], iteration_bounds = array<i64: 1, 1>, scalar_prefetch = 0 : i64, scratch_operands = 0 : i64, tpu.core_type = #tpu.core_type<tc>, window_params = [{transform_indices = @transform_0, window_bounds = array<i64: 8, 128>}, {transform_indices = @transform_1, window_bounds = array<i64: 128, 512>}, {transform_indices = @transform_2, window_bounds = array<i64: 1, 512>}, {transform_indices = @transform_3, window_bounds = array<i64: 8, 512>}]} {
    %c0 = arith.constant 0 : index
    %c0_0 = arith.constant 0 : index
    %0 = vector.load %arg2[%c0, %c0_0] : memref<8x128xbf16, #tpu.memory_space<vmem>>, vector<8x128xbf16>
    %c0_1 = arith.constant 0 : index
    %c0_2 = arith.constant 0 : index
    %1 = vector.load %arg3[%c0_1, %c0_2] : memref<128x512xbf16, #tpu.memory_space<vmem>>, vector<128x512xbf16>
    %cst = arith.constant dense<0.000000e+00> : vector<8x512xf32>
    %2 = tpu.matmul %0, %1, %cst {dimension_numbers = #tpu.dot_dimension_numbers<[1], [0], [0], [1], [0, 0, 1, 1], [], []>} : vector<8x128xbf16>, vector<128x512xbf16>, vector<8x512xf32> -> vector<8x512xf32>
    %c0_3 = arith.constant 0 : index
    %c0_4 = arith.constant 0 : index
    %3 = vector.load %arg4[%c0_3, %c0_4] : memref<1x512xf32, #tpu.memory_space<vmem>>, vector<1x512xf32>
    %4 = vector.broadcast %3 : vector<1x512xf32> to vector<8x512xf32>
    %5 = arith.addf %2, %4 : vector<8x512xf32>
    %6 = arith.negf %5 : vector<8x512xf32>
    %7 = math.exp %6 : vector<8x512xf32>
    %cst_5 = arith.constant 1.000000e+00 : f32
    %8 = vector.broadcast %cst_5 : f32 to vector<8x512xf32>
    %9 = arith.addf %8, %7 : vector<8x512xf32>
    %10 = arith.divf %8, %9 : vector<8x512xf32>
    %c0_6 = arith.constant 0 : index
    %c0_7 = arith.constant 0 : index
    %11 = vector.load %arg5[%c0_6, %c0_7] : memref<8x512xf32, #tpu.memory_space<vmem>>, vector<8x512xf32>
    tpu.vector_store %arg5[%c0_6, %c0_7], %10 {strides = array<i32>} : memref<8x512xf32, #tpu.memory_space<vmem>>, vector<8x512xf32>,
    return
  }
  func.func @transform_0(%arg0: i32, %arg1: i32) -> (i32, i32) {
    %c0_i32 = arith.constant 0 : i32
    %c0_i32_0 = arith.constant 0 : i32
    return %arg1, %c0_i32 : i32, i32
  }
  func.func @transform_1(%arg0: i32, %arg1: i32) -> (i32, i32) {
    %c0_i32 = arith.constant 0 : i32
    %c0_i32_0 = arith.constant 0 : i32
    return %c0_i32, %arg0 : i32, i32
  }
  func.func @transform_2(%arg0: i32, %arg1: i32) -> (i32, i32) {
    %c0_i32 = arith.constant 0 : i32
    %c0_i32_0 = arith.constant 0 : i32
    return %c0_i32, %arg0 : i32, i32
  }
  func.func @transform_3(%arg0: i32, %arg1: i32) -> (i32, i32) {
    %c0_i32 = arith.constant 0 : i32
    return %arg1, %arg0 : i32, i32
  }
}

module attributes {stable_mosaic.version = 11 : i64} {
  func.func @_encoder_kernel(%arg0: i32, %arg1: i32, %arg2: memref<8x512xbf16, #tpu.memory_space<vmem>>, %arg3: memref<512x256xbf16, #tpu.memory_space<vmem>>, %arg4: memref<1x256xf32, #tpu.memory_space<vmem>>, %arg5: memref<256x256xbf16, #tpu.memory_space<vmem>>, %arg6: memref<1x256xf32, #tpu.memory_space<vmem>>, %arg7: memref<8x128xf32, #tpu.memory_space<vmem>>, %arg8: memref<8x128xbf16, #tpu.memory_space<vmem>>, %arg9: memref<8x256xf32, #tpu.memory_space<vmem>>) attributes {dimension_semantics = [#tpu.dimension_semantics<parallel>, #tpu.dimension_semantics<arbitrary>], iteration_bounds = array<i64: 1, 1>, scalar_prefetch = 0 : i64, scratch_operands = 1 : i64, tpu.core_type = #tpu.core_type<tc>, window_params = [{transform_indices = @transform_0, window_bounds = array<i64: 8, 512>}, {transform_indices = @transform_1, window_bounds = array<i64: 512, 256>}, {pipeline_mode = #tpu.pipeline_mode<synchronous>, transform_indices = @transform_2, window_bounds = array<i64: 1, 256>}, {pipeline_mode = #tpu.pipeline_mode<synchronous>, transform_indices = @transform_3, window_bounds = array<i64: 256, 256>}, {pipeline_mode = #tpu.pipeline_mode<synchronous>, transform_indices = @transform_4, window_bounds = array<i64: 1, 256>}, {transform_indices = @transform_5, window_bounds = array<i64: 8, 128>}, {transform_indices = @transform_6, window_bounds = array<i64: 8, 128>}]} {
    %c0_i32 = arith.constant 0 : i32
    %0 = arith.cmpi eq, %arg1, %c0_i32 : i32
    %1 = arith.extui %0 : i1 to i32
    %c0_i32_0 = arith.constant 0 : i32
    %2 = arith.cmpi ne, %1, %c0_i32_0 : i32
    scf.if %2 {
      %cst_10 = arith.constant 0.000000e+00 : f32
      %12 = vector.broadcast %cst_10 : f32 to vector<8x256xf32>
      %c0_11 = arith.constant 0 : index
      %c0_12 = arith.constant 0 : index
      %13 = vector.load %arg9[%c0_11, %c0_12] : memref<8x256xf32, #tpu.memory_space<vmem>>, vector<8x256xf32>
      tpu.vector_store %arg9[%c0_11, %c0_12], %12 {strides = array<i32>} : memref<8x256xf32, #tpu.memory_space<vmem>>, vector<8x256xf32>,
    } else {
    }
    %c0 = arith.constant 0 : index
    %c0_1 = arith.constant 0 : index
    %3 = vector.load %arg9[%c0, %c0_1] : memref<8x256xf32, #tpu.memory_space<vmem>>, vector<8x256xf32>
    %c0_2 = arith.constant 0 : index
    %c0_3 = arith.constant 0 : index
    %4 = vector.load %arg2[%c0_2, %c0_3] : memref<8x512xbf16, #tpu.memory_space<vmem>>, vector<8x512xbf16>
    %c0_4 = arith.constant 0 : index
    %c0_5 = arith.constant 0 : index
    %5 = vector.load %arg3[%c0_4, %c0_5] : memref<512x256xbf16, #tpu.memory_space<vmem>>, vector<512x256xbf16>
    %cst = arith.constant dense<0.000000e+00> : vector<8x256xf32>
    %6 = tpu.matmul %4, %5, %cst {dimension_numbers = #tpu.dot_dimension_numbers<[1], [0], [0], [1], [0, 0, 1, 1], [], []>} : vector<8x512xbf16>, vector<512x256xbf16>, vector<8x256xf32> -> vector<8x256xf32>
    %7 = arith.addf %3, %6 : vector<8x256xf32>
    %c0_6 = arith.constant 0 : index
    %c0_7 = arith.constant 0 : index
    %8 = vector.load %arg9[%c0_6, %c0_7] : memref<8x256xf32, #tpu.memory_space<vmem>>, vector<8x256xf32>
    tpu.vector_store %arg9[%c0_6, %c0_7], %7 {strides = array<i32>} : memref<8x256xf32, #tpu.memory_space<vmem>>, vector<8x256xf32>,
    %c0_i32_8 = arith.constant 0 : i32
    %9 = arith.cmpi eq, %arg1, %c0_i32_8 : i32
    %10 = arith.extui %9 : i1 to i32
    %c0_i32_9 = arith.constant 0 : i32
    %11 = arith.cmpi ne, %10, %c0_i32_9 : i32
    scf.if %11 {
      %c0_10 = arith.constant 0 : index
      %c0_11 = arith.constant 0 : index
      %12 = vector.load %arg9[%c0_10, %c0_11] : memref<8x256xf32, #tpu.memory_space<vmem>>, vector<8x256xf32>
      %c0_12 = arith.constant 0 : index
      %c0_13 = arith.constant 0 : index
      %13 = vector.load %arg4[%c0_12, %c0_13] : memref<1x256xf32, #tpu.memory_space<vmem>>, vector<1x256xf32>
      %14 = vector.broadcast %13 : vector<1x256xf32> to vector<8x256xf32>
      %15 = arith.addf %12, %14 : vector<8x256xf32>
      %cst_14 = arith.constant 0.000000e+00 : f32
      %16 = vector.broadcast %cst_14 : f32 to vector<8x256xf32>
      %17 = arith.maximumf %15, %16 : vector<8x256xf32>
      %18 = arith.truncf %17 : vector<8x256xf32> to vector<8x256xbf16>
      %c0_15 = arith.constant 0 : index
      %c0_16 = arith.constant 0 : index
      %19 = vector.load %arg5[%c0_15, %c0_16] : memref<256x256xbf16, #tpu.memory_space<vmem>>, vector<256x256xbf16>
      %cst_17 = arith.constant dense<0.000000e+00> : vector<8x256xf32>
      %20 = tpu.matmul %18, %19, %cst_17 {dimension_numbers = #tpu.dot_dimension_numbers<[1], [0], [0], [1], [0, 0, 1, 1], [], []>} : vector<8x256xbf16>, vector<256x256xbf16>, vector<8x256xf32> -> vector<8x256xf32>
      %c0_18 = arith.constant 0 : index
      %c0_19 = arith.constant 0 : index
      %21 = vector.load %arg6[%c0_18, %c0_19] : memref<1x256xf32, #tpu.memory_space<vmem>>, vector<1x256xf32>
      %22 = vector.broadcast %21 : vector<1x256xf32> to vector<8x256xf32>
      %23 = arith.addf %20, %22 : vector<8x256xf32>
      %24 = vector.extract_strided_slice %23 {offsets = [0, 0], sizes = [8, 128], strides = [1, 1]} : vector<8x256xf32> to vector<8x128xf32>
      %25 = vector.extract_strided_slice %23 {offsets = [0, 128], sizes = [8, 128], strides = [1, 1]} : vector<8x256xf32> to vector<8x128xf32>
      %cst_20 = arith.constant 5.000000e-01 : f32
      %26 = vector.broadcast %cst_20 : f32 to vector<8x128xf32>
      %27 = arith.mulf %26, %25 : vector<8x128xf32>
      %28 = math.exp %27 : vector<8x128xf32>
      %c0_21 = arith.constant 0 : index
      %c0_22 = arith.constant 0 : index
      %29 = vector.load %arg7[%c0_21, %c0_22] : memref<8x128xf32, #tpu.memory_space<vmem>>, vector<8x128xf32>
      %30 = arith.mulf %28, %29 : vector<8x128xf32>
      %31 = arith.addf %24, %30 : vector<8x128xf32>
      %32 = arith.truncf %31 : vector<8x128xf32> to vector<8x128xbf16>
      %c0_23 = arith.constant 0 : index
      %c0_24 = arith.constant 0 : index
      %33 = vector.load %arg8[%c0_23, %c0_24] : memref<8x128xbf16, #tpu.memory_space<vmem>>, vector<8x128xbf16>
      tpu.vector_store %arg8[%c0_23, %c0_24], %32 {strides = array<i32>} : memref<8x128xbf16, #tpu.memory_space<vmem>>, vector<8x128xbf16>,
    } else {
    }
    return
  }
  func.func @transform_0(%arg0: i32, %arg1: i32) -> (i32, i32) {
    %c0_i32 = arith.constant 0 : i32
    return %arg0, %arg1 : i32, i32
  }
  func.func @transform_1(%arg0: i32, %arg1: i32) -> (i32, i32) {
    %c0_i32 = arith.constant 0 : i32
    %c0_i32_0 = arith.constant 0 : i32
    return %arg1, %c0_i32 : i32, i32
  }
  func.func @transform_2(%arg0: i32, %arg1: i32) -> (i32, i32) {
    %c0_i32 = arith.constant 0 : i32
    %c0_i32_0 = arith.constant 0 : i32
    %c0_i32_1 = arith.constant 0 : i32
    return %c0_i32, %c0_i32_0 : i32, i32
  }
  func.func @transform_3(%arg0: i32, %arg1: i32) -> (i32, i32) {
    %c0_i32 = arith.constant 0 : i32
    %c0_i32_0 = arith.constant 0 : i32
    %c0_i32_1 = arith.constant 0 : i32
    return %c0_i32, %c0_i32_0 : i32, i32
  }
  func.func @transform_4(%arg0: i32, %arg1: i32) -> (i32, i32) {
    %c0_i32 = arith.constant 0 : i32
    %c0_i32_0 = arith.constant 0 : i32
    %c0_i32_1 = arith.constant 0 : i32
    return %c0_i32, %c0_i32_0 : i32, i32
  }
  func.func @transform_5(%arg0: i32, %arg1: i32) -> (i32, i32) {
    %c0_i32 = arith.constant 0 : i32
    %c0_i32_0 = arith.constant 0 : i32
    return %arg0, %c0_i32 : i32, i32
  }
  func.func @transform_6(%arg0: i32, %arg1: i32) -> (i32, i32) {
    %c0_i32 = arith.constant 0 : i32
    %c0_i32_0 = arith.constant 0 : i32
    return %arg0, %c0_i32 : i32, i32
  }
}

</mosaic_0001>

<llo_original>
// kernel: cvae_forward.3
$region0: #{cvae_forward.3}
  #allocation0 [shape = 'u32[]', space=smem, size = 0x4, offset = 0x4, fixed_abs, tag = 'smem constant byte address 0x4 - core index']
  #allocation1 [shape = 'u32[144,128]{1,0:T(1,128)}', space=vmem, size = 0x12000, scoped, tag = 'internal scratch']
  %s0 = inlined_call_operand.vmem [shape: bf16[8,128], index: 0, kind: input, shape index: {}]
  %s1 = inlined_call_operand.vmem [shape: bf16[128,512], index: 1, kind: input, shape index: {}]
  %s2 = inlined_call_operand.vmem [shape: f32[1,512], index: 2, kind: input, shape index: {}]
  %s3 = inlined_call_operand.hbm [shape: f32[8,512], index: 3, kind: output, shape index: {}]
  %s4 = sld [smem:[#allocation0]]
  $region22: #{cvae_forward.3} parent=0
    _
  %s6 = ssub.s32 1, %s4
  %s7 = scalar_select 0, %s6, %s4
  $region1: #{cvae_forward.3} parent=0
    #allocation2 [shape = 'u8[16384]{0}', space=vmem, size = 0x4000, scoped, tag = 'output window, operand 0, single buffered']
    #allocation3 [shape = 's32[1]{0}', space=sflag, size = 0x4, scoped, tag = 'scoped memory for cvae_forward.3']
    %8 = vsyncpa [#allocation3], 0
    // Predicated region
    $region2: #{cvae_forward.3} parent=1 // pred_check
      _
    $region3: #{cvae_forward.3} parent=1 // pred_check_branch
      %10 = sbr.rel (0) target = $region5
    $region4: #{cvae_forward.3} parent=1 // pred_region
      _
    $region5: #{cvae_forward.3} parent=1 // pred_fallthru
      _
    // Predicated region
    $region6: #{cvae_forward.3} parent=1 // pred_check
      _
    $region7: #{cvae_forward.3} parent=1 // pred_check_branch
      %12 = sbr.rel (0) target = $region9
    $region8: #{cvae_forward.3} parent=1 // pred_region
      _
    $region9: #{cvae_forward.3} parent=1 // pred_fallthru
      _
    // Predicated region
    $region10: #{cvae_forward.3} parent=1 // pred_check
      _
    $region11: #{cvae_forward.3} parent=1 // pred_check_branch
      %14 = sbr.rel (0) target = $region13
    $region12: #{cvae_forward.3} parent=1 // pred_region
      _
    $region13: #{cvae_forward.3} parent=1 // pred_fallthru
      _
    %v16 = vld [vmem:[%s0] sm:$0xf]
    %v17 = vld [vmem:[%s1] sm:$0xff]
    %v18 = vld [vmem:[%s1 + $0x8] sm:$0xff]
    %v19 = vld [vmem:[%s1 + $0x10] sm:$0xff]
    %v20 = vld [vmem:[%s1 + $0x18] sm:$0xff]
    %v21 = vld [vmem:[%s1 + $0x20] sm:$0xff]
    %v22 = vld [vmem:[%s1 + $0x28] sm:$0xff]
    %v23 = vld [vmem:[%s1 + $0x30] sm:$0xff]
    %v24 = vld [vmem:[%s1 + $0x38] sm:$0xff]
    %v25 = vld [vmem:[%s1 + $0x40] sm:$0xff]
    %v26 = vld [vmem:[%s1 + $0x48] sm:$0xff]
    %v27 = vld [vmem:[%s1 + $0x50] sm:$0xff]
    %v28 = vld [vmem:[%s1 + $0x58] sm:$0xff]
    %v29 = vld [vmem:[%s1 + $0x60] sm:$0xff]
    %v30 = vld [vmem:[%s1 + $0x68] sm:$0xff]
    %v31 = vld [vmem:[%s1 + $0x70] sm:$0xff]
    %v32 = vld [vmem:[%s1 + $0x78] sm:$0xff]
    %v33 = vld [vmem:[%s1 + $0x80] sm:$0xff]
    %v34 = vld [vmem:[%s1 + $0x88] sm:$0xff]
    %v35 = vld [vmem:[%s1 + $0x90] sm:$0xff]
    %v36 = vld [vmem:[%s1 + $0x98] sm:$0xff]
    %v37 = vld [vmem:[%s1 + $0xa0] sm:$0xff]
    %v38 = vld [vmem:[%s1 + $0xa8] sm:$0xff]
    %v39 = vld [vmem:[%s1 + $0xb0] sm:$0xff]
    %v40 = vld [vmem:[%s1 + $0xb8] sm:$0xff]
    %v41 = vld [vmem:[%s1 + $0xc0] sm:$0xff]
    %v42 = vld [vmem:[%s1 + $0xc8] sm:$0xff]
    %v43 = vld [vmem:[%s1 + $0xd0] sm:$0xff]
    %v44 = vld [vmem:[%s1 + $0xd8] sm:$0xff]
    %v45 = vld [vmem:[%s1 + $0xe0] sm:$0xff]
    %v46 = vld [vmem:[%s1 + $0xe8] sm:$0xff]
    %v47 = vld [vmem:[%s1 + $0xf0] sm:$0xff]
    %v48 = vld [vmem:[%s1 + $0xf8] sm:$0xff]
    %v49 = vld [vmem:[%s2] sm:$0xf]
    %v51 = vlaneseq
    %v52 = vshrl.u32 %v51, 7
    %v53 = vsub.s32 0, %v52
    %v54 = vrot.slane %v49, %v53
    %v55 = vlaneseq
    %v56 = vshrl.u32 %v55, 7
    %v57 = vsub.s32 1, %v56
    %v58 = vrot.slane %v49, %v57
    %v59 = vlaneseq
    %v60 = vshrl.u32 %v59, 7
    %v61 = vsub.s32 2, %v60
    %v62 = vrot.slane %v49, %v61
    %v63 = vlaneseq
    %v64 = vshrl.u32 %v63, 7
    %v65 = vsub.s32 3, %v64
    %v66 = vrot.slane %v49, %v65
    %v103 = vunpack.c.l.b16 %v17
    %v104 = vunpack.c.h.b16 %v17
    %v105 = vunpack.c.l.b16 %v18
    %v106 = vunpack.c.h.b16 %v18
    %v107 = vunpack.c.l.b16 %v19
    %v108 = vunpack.c.h.b16 %v19
    %v109 = vunpack.c.l.b16 %v20
    %v110 = vunpack.c.h.b16 %v20
    %v111 = vunpack.c.l.b16 %v21
    %v112 = vunpack.c.h.b16 %v21
    %v113 = vunpack.c.l.b16 %v22
    %v114 = vunpack.c.h.b16 %v22
    %v115 = vunpack.c.l.b16 %v23
    %v116 = vunpack.c.h.b16 %v23
    %v117 = vunpack.c.l.b16 %v24
    %v118 = vunpack.c.h.b16 %v24
    %v119 = vunpack.c.l.b16 %v25
    %v120 = vunpack.c.h.b16 %v25
    %v121 = vunpack.c.l.b16 %v26
    %v122 = vunpack.c.h.b16 %v26
    %v123 = vunpack.c.l.b16 %v27
    %v124 = vunpack.c.h.b16 %v27
    %v125 = vunpack.c.l.b16 %v28
    %v126 = vunpack.c.h.b16 %v28
    %v127 = vunpack.c.l.b16 %v29
    %v128 = vunpack.c.h.b16 %v29
    %v129 = vunpack.c.l.b16 %v30
    %v130 = vunpack.c.h.b16 %v30
    %v131 = vunpack.c.l.b16 %v31
    %v132 = vunpack.c.h.b16 %v31
    %v133 = vunpack.c.l.b16 %v32
    %v134 = vunpack.c.h.b16 %v32
    %v135 = vunpack.c.l.b16 %v33
    %v136 = vunpack.c.h.b16 %v33
    %v137 = vunpack.c.l.b16 %v34
    %v138 = vunpack.c.h.b16 %v34
    %v139 = vunpack.c.l.b16 %v35
    %v140 = vunpack.c.h.b16 %v35
    %v141 = vunpack.c.l.b16 %v36
    %v142 = vunpack.c.h.b16 %v36
    %v143 = vunpack.c.l.b16 %v37
    %v144 = vunpack.c.h.b16 %v37
    %v145 = vunpack.c.l.b16 %v38
    %v146 = vunpack.c.h.b16 %v38
    %v147 = vunpack.c.l.b16 %v39
    %v148 = vunpack.c.h.b16 %v39
    %v149 = vunpack.c.l.b16 %v40
    %v150 = vunpack.c.h.b16 %v40
    %v151 = vunpack.c.l.b16 %v41
    %v152 = vunpack.c.h.b16 %v41
    %v153 = vunpack.c.l.b16 %v42
    %v154 = vunpack.c.h.b16 %v42
    %v155 = vunpack.c.l.b16 %v43
    %v156 = vunpack.c.h.b16 %v43
    %v157 = vunpack.c.l.b16 %v44
    %v158 = vunpack.c.h.b16 %v44
    %v159 = vunpack.c.l.b16 %v45
    %v160 = vunpack.c.h.b16 %v45
    %v161 = vunpack.c.l.b16 %v46
    %v162 = vunpack.c.h.b16 %v46
    %v163 = vunpack.c.l.b16 %v47
    %v164 = vunpack.c.h.b16 %v47
    %v165 = vunpack.c.l.b16 %v48
    %v166 = vunpack.c.h.b16 %v48
    %v167 = vpack.c.b16 %v107, %v103
    %v168 = vpack.c.b16 %v108, %v104
    %v169 = vpack.c.b16 %v109, %v105
    %v170 = vpack.c.b16 %v110, %v106
    %v171 = vpack.c.b16 %v115, %v111
    %v172 = vpack.c.b16 %v116, %v112
    %v173 = vpack.c.b16 %v117, %v113
    %v174 = vpack.c.b16 %v118, %v114
    %v175 = vpack.c.b16 %v123, %v119
    %v176 = vpack.c.b16 %v124, %v120
    %v177 = vpack.c.b16 %v125, %v121
    %v178 = vpack.c.b16 %v126, %v122
    %v179 = vpack.c.b16 %v131, %v127
    %v180 = vpack.c.b16 %v132, %v128
    %v181 = vpack.c.b16 %v133, %v129
    %v182 = vpack.c.b16 %v134, %v130
    %v183 = vpack.c.b16 %v139, %v135
    %v184 = vpack.c.b16 %v140, %v136
    %v185 = vpack.c.b16 %v141, %v137
    %v186 = vpack.c.b16 %v142, %v138
    %v187 = vpack.c.b16 %v147, %v143
    %v188 = vpack.c.b16 %v148, %v144
    %v189 = vpack.c.b16 %v149, %v145
    %v190 = vpack.c.b16 %v150, %v146
    %v191 = vpack.c.b16 %v155, %v151
    %v192 = vpack.c.b16 %v156, %v152
    %v193 = vpack.c.b16 %v157, %v153
    %v194 = vpack.c.b16 %v158, %v154
    %v195 = vpack.c.b16 %v163, %v159
    %v196 = vpack.c.b16 %v164, %v160
    %v197 = vpack.c.b16 %v165, %v161
    %v198 = vpack.c.b16 %v166, %v162
    %231 = vmatprep.subr.bf16.mxu0 %v168
    %232 = vmatpush1.bf16.msra.mxu0 %v167
    %233 = vmatprep.subr.bf16.mxu0 %v172
    %234 = vmatpush1.bf16.msra.mxu0 %v171
    %235 = vmatprep.subr.bf16.mxu0 %v176
    %236 = vmatpush1.bf16.msra.mxu0 %v175
    %237 = vmatprep.subr.bf16.mxu0 %v180
    %238 = vmatpush1.bf16.msra.mxu0 %v179
    %239 = vmatprep.subr.bf16.mxu0 %v184
    %240 = vmatpush1.bf16.msra.mxu0 %v183
    %241 = vmatprep.subr.bf16.mxu0 %v188
    %242 = vmatpush1.bf16.msra.mxu0 %v187
    %243 = vmatprep.subr.bf16.mxu0 %v192
    %244 = vmatpush1.bf16.msra.mxu0 %v191
    %245 = vmatprep.subr.bf16.mxu0 %v196
    %246 = vmatpush1.bf16.msra.mxu0 %v195
    %247 = vmatprep.subr.bf16.mxu0 0
    %248 = vmatpush1.bf16.msra.mxu0 0
    %249 = vmatprep.subr.bf16.mxu0 0
    %250 = vmatpush1.bf16.msra.mxu0 0
    %251 = vmatprep.subr.bf16.mxu0 0
    %252 = vmatpush1.bf16.msra.mxu0 0
    %253 = vmatprep.subr.bf16.mxu0 0
    %254 = vmatpush1.bf16.msra.mxu0 0
    %255 = vmatprep.subr.bf16.mxu0 0
    %256 = vmatpush1.bf16.msra.mxu0 0
    %257 = vmatprep.subr.bf16.mxu0 0
    %258 = vmatpush1.bf16.msra.mxu0 0
    %259 = vmatprep.subr.bf16.mxu0 0
    %260 = vmatpush1.bf16.msra.mxu0 0
    %261 = vmatprep.subr.bf16.mxu0 0
    %262 = vmatpush1.bf16.msra.mxu0 0
    %263 = vmatprep.mubr.bf16.mxu0 0
    %264 = vmatmul.mubr.bf16.gmra.mrb[0].mxu0 %v16
    %v265 = vpop.f32.mrb[0].mxu0
    %v266 = vadd.f32 %v54, %v265
    %v267 = vpop.f32.mrb[0].mxu0
    %v268 = vadd.f32 %v58, %v267
    %v269 = vpop.f32.mrb[0].mxu0
    %v270 = vpop.f32.mrb[0].mxu0
    %271 = vdwg.mxu0
    %272 = vmatprep.subr.bf16.mxu0 %v170
    %273 = vmatpush1.bf16.msra.mxu0 %v169
    %274 = vmatprep.subr.bf16.mxu0 %v174
    %275 = vmatpush1.bf16.msra.mxu0 %v173
    %276 = vmatprep.subr.bf16.mxu0 %v178
    %277 = vmatpush1.bf16.msra.mxu0 %v177
    %278 = vmatprep.subr.bf16.mxu0 %v182
    %279 = vmatpush1.bf16.msra.mxu0 %v181
    %280 = vmatprep.subr.bf16.mxu0 %v186
    %281 = vmatpush1.bf16.msra.mxu0 %v185
    %282 = vmatprep.subr.bf16.mxu0 %v190
    %283 = vmatpush1.bf16.msra.mxu0 %v189
    %284 = vmatprep.subr.bf16.mxu0 %v194
    %285 = vmatpush1.bf16.msra.mxu0 %v193
    %286 = vmatprep.subr.bf16.mxu0 %v198
    %287 = vmatpush1.bf16.msra.mxu0 %v197
    %288 = vmatprep.subr.bf16.mxu0 0
    %289 = vmatpush1.bf16.msra.mxu0 0
    %290 = vmatprep.subr.bf16.mxu0 0
    %291 = vmatpush1.bf16.msra.mxu0 0
    %292 = vmatprep.subr.bf16.mxu0 0
    %293 = vmatpush1.bf16.msra.mxu0 0
    %294 = vmatprep.subr.bf16.mxu0 0
    %295 = vmatpush1.bf16.msra.mxu0 0
    %296 = vmatprep.subr.bf16.mxu0 0
    %297 = vmatpush1.bf16.msra.mxu0 0
    %298 = vmatprep.subr.bf16.mxu0 0
    %299 = vmatpush1.bf16.msra.mxu0 0
    %300 = vmatprep.subr.bf16.mxu0 0
    %301 = vmatpush1.bf16.msra.mxu0 0
    %302 = vmatprep.subr.bf16.mxu0 0
    %303 = vmatpush1.bf16.msra.mxu0 0
    %304 = vmatprep.mubr.bf16.mxu0 0
    %305 = vmatmul.mubr.bf16.gmra.mrb[0].mxu0 %v16
    %v306 = vpop.f32.mrb[0].mxu0
    %v307 = vadd.f32 %v62, %v306
    %v308 = vpop.f32.mrb[0].mxu0
    %v309 = vadd.f32 %v66, %v308
    %v310 = vpop.f32.mrb[0].mxu0
    %v311 = vpop.f32.mrb[0].mxu0
    %312 = vdwg.mxu0
    %v313 = vxor.u32 %v266, 2147483648
    %v314 = vxor.u32 %v268, 2147483648
    %v315 = vxor.u32 %v307, 2147483648
    %v316 = vxor.u32 %v309, 2147483648
    %v317 = vmul.f32 %v313, 1.442695
    %v318 = vpow.pop %v317
    %v319 = vmul.f32 %v314, 1.442695
    %v320 = vpow.pop %v319
    %v321 = vmul.f32 %v315, 1.442695
    %v322 = vpow.pop %v321
    %v323 = vmul.f32 %v316, 1.442695
    %v324 = vpow.pop %v323
    %v325 = vadd.f32 %v318, 1.0
    %v326 = vadd.f32 %v320, 1.0
    %v327 = vadd.f32 %v322, 1.0
    %v328 = vadd.f32 %v324, 1.0
    %v329 = vrcp.pop %v325
    %v330 = vmul.f32 1.0, %v329
    %v331 = vrcp.pop %v326
    %v332 = vmul.f32 1.0, %v331
    %v333 = vrcp.pop %v327
    %v334 = vmul.f32 1.0, %v333
    %v335 = vrcp.pop %v328
    %v336 = vmul.f32 1.0, %v335
    %337 = vst [vmem:[#allocation2] sm:$0xff] %v330
    %338 = vst [vmem:[#allocation2 + $0x8] sm:$0xff] %v332
    %339 = vst [vmem:[#allocation2 + $0x10] sm:$0xff] %v334
    %340 = vst [vmem:[#allocation2 + $0x18] sm:$0xff] %v336
    // Predicated region
    $region14: #{cvae_forward.3} parent=1 // pred_check
      _
    $region15: #{cvae_forward.3} parent=1 // pred_check_branch
      %342 = sbr.rel (0) target = $region17
    $region16: #{cvae_forward.3} parent=1 // pred_region
      %s344 = ssub.s32 512, 512
      %345 = vsyncadd [#allocation3], %s344
      %s347 = sshll.u32 [#allocation2], 4
      %s348 = int_to_ptr.vmem [resolvable:$true] %s347
      %350 = dma.vmem_to_hbm [thread:$0]  %s348, 512, %s3, [#allocation3]
    $region17: #{cvae_forward.3} parent=1 // pred_fallthru
      _
    // Predicated region
    $region18: #{cvae_forward.3} parent=1 // pred_check
      _
    $region19: #{cvae_forward.3} parent=1 // pred_check_branch
      %352 = sbr.rel (0) target = $region21
    $region20: #{cvae_forward.3} parent=1 // pred_region
      %353 = dma.done [#allocation3], 512
    $region21: #{cvae_forward.3} parent=1 // pred_fallthru
      _
    %354 = vsyncpa [#allocation3], 1

// kernel: cvae_forward.2
$region0: #{cvae_forward.2}
  #allocation0 [shape = 'u32[]', space=smem, size = 0x4, offset = 0x4, fixed_abs, tag = 'smem constant byte address 0x4 - core index']
  #allocation1 [shape = 'u32[144,128]{1,0:T(1,128)}', space=vmem, size = 0x12000, scoped, tag = 'internal scratch']
  #allocation2 [shape = 'f32[8,256]{1,0:T(8,128)}', space=vmem, size = 0x2000, scoped, tag = 'scratch operand']
  %s0 = inlined_call_operand.hbm [shape: bf16[8,512], index: 0, kind: input, shape index: {}]
  %s1 = inlined_call_operand.hbm [shape: bf16[512,256], index: 1, kind: input, shape index: {}]
  %s2 = inlined_call_operand.vmem [shape: f32[1,256], index: 2, kind: input, shape index: {}]
  %s3 = inlined_call_operand.hbm [shape: bf16[256,256], index: 3, kind: input, shape index: {}]
  %s4 = inlined_call_operand.vmem [shape: f32[1,256], index: 4, kind: input, shape index: {}]
  %s5 = inlined_call_operand.vmem [shape: f32[8,128], index: 5, kind: input, shape index: {}]
  %s6 = inlined_call_operand.vmem [shape: bf16[8,128], index: 6, kind: output, shape index: {}]
  %s7 = sld [smem:[#allocation0]]
  $region54: #{cvae_forward.2} parent=0
    _
  %s9 = ssub.s32 1, %s7
  %s10 = scalar_select 0, %s9, %s7
  $region1: #{cvae_forward.2} parent=0
    #allocation3 [shape = 'u8[8192]{0}', space=vmem, size = 0x2000, scoped, tag = 'input window, operand 0, single buffered']
    #allocation4 [shape = 's32[1]{0}', space=sflag, size = 0x4, scoped, tag = 'scoped memory for cvae_forward.2']
    #allocation5 [shape = 'u8[262144]{0}', space=vmem, size = 0x40000, scoped, tag = 'input window, operand 1, single buffered']
    #allocation6 [shape = 's32[1]{0}', space=sflag, size = 0x4, scoped, tag = 'scoped memory for cvae_forward.2']
    #allocation7 [shape = 'u8[131072]{0}', space=vmem, size = 0x20000, scoped, tag = 'input window, operand 3, single buffered']
    %11 = vsyncpa [#allocation4], 0
    %12 = vsyncpa [#allocation6], 0
    // Predicated region
    $region2: #{cvae_forward.2} parent=1 // pred_check
      _
    $region3: #{cvae_forward.2} parent=1 // pred_check_branch
      %14 = sbr.rel (0) target = $region5
    $region4: #{cvae_forward.2} parent=1 // pred_region
      %s16 = ssub.s32 256, 256
      %17 = vsyncadd [#allocation4], %s16
      %s19 = sshll.u32 [#allocation3], 4
      %s20 = int_to_ptr.vmem [resolvable:$true] %s19
      %22 = dma.hbm_to_vmem [thread:$0]  %s0, 256, %s20, [#allocation4]
    $region5: #{cvae_forward.2} parent=1 // pred_fallthru
      _
    // Predicated region
    $region6: #{cvae_forward.2} parent=1 // pred_check
      _
    $region7: #{cvae_forward.2} parent=1 // pred_check_branch
      %24 = sbr.rel (0) target = $region9
    $region8: #{cvae_forward.2} parent=1 // pred_region
      %s26 = ssub.s32 8192, 8192
      %27 = vsyncadd [#allocation6], %s26
      %s28 = sshll.u32 [#allocation5], 4
      %s29 = int_to_ptr.vmem [resolvable:$true] %s28
      %34 = dma.hbm_to_vmem [thread:$0]  %s1, 8192, %s29, [#allocation6], 128, 128, 8
    $region9: #{cvae_forward.2} parent=1 // pred_fallthru
      _
    // Predicated region
    $region10: #{cvae_forward.2} parent=1 // pred_check
      _
    $region11: #{cvae_forward.2} parent=1 // pred_check_branch
      %36 = sbr.rel (0) target = $region13
    $region12: #{cvae_forward.2} parent=1 // pred_region
      _
    $region13: #{cvae_forward.2} parent=1 // pred_fallthru
      _
    // Predicated region
    $region14: #{cvae_forward.2} parent=1 // pred_check
      _
    $region15: #{cvae_forward.2} parent=1 // pred_check_branch
      %38 = sbr.rel (0) target = $region17
    $region16: #{cvae_forward.2} parent=1 // pred_region
      %s40 = ssub.s32 4096, 4096
      %41 = vsyncadd [#allocation6], %s40
      %s42 = sshll.u32 [#allocation7], 4
      %s43 = int_to_ptr.vmem [resolvable:$true] %s42
      %48 = dma.hbm_to_vmem [thread:$0]  %s3, 4096, %s43, [#allocation6], 128, 128, 8
    $region17: #{cvae_forward.2} parent=1 // pred_fallthru
      _
    // Predicated region
    $region18: #{cvae_forward.2} parent=1 // pred_check
      _
    $region19: #{cvae_forward.2} parent=1 // pred_check_branch
      %50 = sbr.rel (0) target = $region21
    $region20: #{cvae_forward.2} parent=1 // pred_region
      _
    $region21: #{cvae_forward.2} parent=1 // pred_fallthru
      _
    // Predicated region
    $region22: #{cvae_forward.2} parent=1 // pred_check
      _
    $region23: #{cvae_forward.2} parent=1 // pred_check_branch
      %52 = sbr.rel (0) target = $region25
    $region24: #{cvae_forward.2} parent=1 // pred_region
      _
    $region25: #{cvae_forward.2} parent=1 // pred_fallthru
      _
    // Predicated region
    $region26: #{cvae_forward.2} parent=1 // pred_check
      _
    $region27: #{cvae_forward.2} parent=1 // pred_check_branch
      %54 = sbr.rel (0) target = $region29
    $region28: #{cvae_forward.2} parent=1 // pred_region
      %55 = dma.done [#allocation4], 256
    $region29: #{cvae_forward.2} parent=1 // pred_fallthru
      _
    // Predicated region
    $region30: #{cvae_forward.2} parent=1 // pred_check
      _
    $region31: #{cvae_forward.2} parent=1 // pred_check_branch
      %57 = sbr.rel (0) target = $region33
    $region32: #{cvae_forward.2} parent=1 // pred_region
      %58 = dma.done [#allocation6], 8192
    $region33: #{cvae_forward.2} parent=1 // pred_fallthru
      _
    // Predicated region
    $region34: #{cvae_forward.2} parent=1 // pred_check
      _
    $region35: #{cvae_forward.2} parent=1 // pred_check_branch
      %60 = sbr.rel (0) target = $region37
    $region36: #{cvae_forward.2} parent=1 // pred_region
      %61 = dma.done [#allocation6], 4096
    $region37: #{cvae_forward.2} parent=1 // pred_fallthru
      _
    %p62 = scmp.eq.s32.totalorder 0, 0
    // Predicated region
    $region38: #{cvae_forward.2} parent=1 // pred_check
      %p63 = pneg %p62
    $region39: #{cvae_forward.2} parent=1 // pred_check_branch
      %65 = sbr.rel (%p63) target = $region41
    $region40: #{cvae_forward.2} parent=1 // pred_region
      %66 = vst [vmem:[#allocation2] sm:$0xff] 0.0
      %67 = vst [vmem:[#allocation2 + $0x8] sm:$0xff] 0.0
    $region41: #{cvae_forward.2} parent=1 // pred_fallthru
      _
    %v68 = vld [vmem:[#allocation2] sm:$0xff]
    %v69 = vld [vmem:[#allocation2 + $0x8] sm:$0xff]
    %v70 = vld [vmem:[#allocation3] sm:$0xff]
    %v71 = vld [vmem:[#allocation3 + $0x8] sm:$0xff]
    %v72 = vld [vmem:[#allocation5] sm:$0xff]
    %v73 = vld [vmem:[#allocation5 + $0x8] sm:$0xff]
    %v74 = vld [vmem:[#allocation5 + $0x10] sm:$0xff]
    %v75 = vld [vmem:[#allocation5 + $0x18] sm:$0xff]
    %v76 = vld [vmem:[#allocation5 + $0x20] sm:$0xff]
    %v77 = vld [vmem:[#allocation5 + $0x28] sm:$0xff]
    %v78 = vld [vmem:[#allocation5 + $0x30] sm:$0xff]
    %v79 = vld [vmem:[#allocation5 + $0x38] sm:$0xff]
    %v80 = vld [vmem:[#allocation5 + $0x40] sm:$0xff]
    %v81 = vld [vmem:[#allocation5 + $0x48] sm:$0xff]
    %v82 = vld [vmem:[#allocation5 + $0x50] sm:$0xff]
    %v83 = vld [vmem:[#allocation5 + $0x58] sm:$0xff]
    %v84 = vld [vmem:[#allocation5 + $0x60] sm:$0xff]
    %v85 = vld [vmem:[#allocation5 + $0x68] sm:$0xff]
    %v86 = vld [vmem:[#allocation5 + $0x70] sm:$0xff]
    %v87 = vld [vmem:[#allocation5 + $0x78] sm:$0xff]
    %v88 = vld [vmem:[#allocation5 + $0x80] sm:$0xff]
    %v89 = vld [vmem:[#allocation5 + $0x88] sm:$0xff]
    %v90 = vld [vmem:[#allocation5 + $0x90] sm:$0xff]
    %v91 = vld [vmem:[#allocation5 + $0x98] sm:$0xff]
    %v92 = vld [vmem:[#allocation5 + $0xa0] sm:$0xff]
    %v93 = vld [vmem:[#allocation5 + $0xa8] sm:$0xff]
    %v94 = vld [vmem:[#allocation5 + $0xb0] sm:$0xff]
    %v95 = vld [vmem:[#allocation5 + $0xb8] sm:$0xff]
    %v96 = vld [vmem:[#allocation5 + $0xc0] sm:$0xff]
    %v97 = vld [vmem:[#allocation5 + $0xc8] sm:$0xff]
    %v98 = vld [vmem:[#allocation5 + $0xd0] sm:$0xff]
    %v99 = vld [vmem:[#allocation5 + $0xd8] sm:$0xff]
    %v100 = vld [vmem:[#allocation5 + $0xe0] sm:$0xff]
    %v101 = vld [vmem:[#allocation5 + $0xe8] sm:$0xff]
    %v102 = vld [vmem:[#allocation5 + $0xf0] sm:$0xff]
    %v103 = vld [vmem:[#allocation5 + $0xf8] sm:$0xff]
    %v104 = vld [vmem:[#allocation5 + $0x100] sm:$0xff]
    %v105 = vld [vmem:[#allocation5 + $0x108] sm:$0xff]
    %v106 = vld [vmem:[#allocation5 + $0x110] sm:$0xff]
    %v107 = vld [vmem:[#allocation5 + $0x118] sm:$0xff]
    %v108 = vld [vmem:[#allocation5 + $0x120] sm:$0xff]
    %v109 = vld [vmem:[#allocation5 + $0x128] sm:$0xff]
    %v110 = vld [vmem:[#allocation5 + $0x130] sm:$0xff]
    %v111 = vld [vmem:[#allocation5 + $0x138] sm:$0xff]
    %v112 = vld [vmem:[#allocation5 + $0x140] sm:$0xff]
    %v113 = vld [vmem:[#allocation5 + $0x148] sm:$0xff]
    %v114 = vld [vmem:[#allocation5 + $0x150] sm:$0xff]
    %v115 = vld [vmem:[#allocation5 + $0x158] sm:$0xff]
    %v116 = vld [vmem:[#allocation5 + $0x160] sm:$0xff]
    %v117 = vld [vmem:[#allocation5 + $0x168] sm:$0xff]
    %v118 = vld [vmem:[#allocation5 + $0x170] sm:$0xff]
    %v119 = vld [vmem:[#allocation5 + $0x178] sm:$0xff]
    %v120 = vld [vmem:[#allocation5 + $0x180] sm:$0xff]
    %v121 = vld [vmem:[#allocation5 + $0x188] sm:$0xff]
    %v122 = vld [vmem:[#allocation5 + $0x190] sm:$0xff]
    %v123 = vld [vmem:[#allocation5 + $0x198] sm:$0xff]
    %v124 = vld [vmem:[#allocation5 + $0x1a0] sm:$0xff]
    %v125 = vld [vmem:[#allocation5 + $0x1a8] sm:$0xff]
    %v126 = vld [vmem:[#allocation5 + $0x1b0] sm:$0xff]
    %v127 = vld [vmem:[#allocation5 + $0x1b8] sm:$0xff]
    %v128 = vld [vmem:[#allocation5 + $0x1c0] sm:$0xff]
    %v129 = vld [vmem:[#allocation5 + $0x1c8] sm:$0xff]
    %v130 = vld [vmem:[#allocation5 + $0x1d0] sm:$0xff]
    %v131 = vld [vmem:[#allocation5 + $0x1d8] sm:$0xff]
    %v132 = vld [vmem:[#allocation5 + $0x1e0] sm:$0xff]
    %v133 = vld [vmem:[#allocation5 + $0x1e8] sm:$0xff]
    %v134 = vld [vmem:[#allocation5 + $0x1f0] sm:$0xff]
    %v135 = vld [vmem:[#allocation5 + $0x1f8] sm:$0xff]
    %v138 = vunpack.c.l.b16 %v70
    %v139 = vunpack.c.h.b16 %v70
    %v140 = vunpack.c.l.b16 %v71
    %v141 = vunpack.c.h.b16 %v71
    %v142 = vpack.c.b16 %v138, %v138
    %v143 = vpack.c.b16 %v139, %v139
    %v144 = vpack.c.b16 %v140, %v140
    %v145 = vpack.c.b16 %v141, %v141
    %v214 = vunpack.c.l.b16 %v72
    %v215 = vunpack.c.h.b16 %v72
    %v216 = vunpack.c.l.b16 %v73
    %v217 = vunpack.c.h.b16 %v73
    %v218 = vunpack.c.l.b16 %v74
    %v219 = vunpack.c.h.b16 %v74
    %v220 = vunpack.c.l.b16 %v75
    %v221 = vunpack.c.h.b16 %v75
    %v222 = vunpack.c.l.b16 %v76
    %v223 = vunpack.c.h.b16 %v76
    %v224 = vunpack.c.l.b16 %v77
    %v225 = vunpack.c.h.b16 %v77
    %v226 = vunpack.c.l.b16 %v78
    %v227 = vunpack.c.h.b16 %v78
    %v228 = vunpack.c.l.b16 %v79
    %v229 = vunpack.c.h.b16 %v79
    %v230 = vunpack.c.l.b16 %v80
    %v231 = vunpack.c.h.b16 %v80
    %v232 = vunpack.c.l.b16 %v81
    %v233 = vunpack.c.h.b16 %v81
    %v234 = vunpack.c.l.b16 %v82
    %v235 = vunpack.c.h.b16 %v82
    %v236 = vunpack.c.l.b16 %v83
    %v237 = vunpack.c.h.b16 %v83
    %v238 = vunpack.c.l.b16 %v84
    %v239 = vunpack.c.h.b16 %v84
    %v240 = vunpack.c.l.b16 %v85
    %v241 = vunpack.c.h.b16 %v85
    %v242 = vunpack.c.l.b16 %v86
    %v243 = vunpack.c.h.b16 %v86
    %v244 = vunpack.c.l.b16 %v87
    %v245 = vunpack.c.h.b16 %v87
    %v246 = vunpack.c.l.b16 %v88
    %v247 = vunpack.c.h.b16 %v88
    %v248 = vunpack.c.l.b16 %v89
    %v249 = vunpack.c.h.b16 %v89
    %v250 = vunpack.c.l.b16 %v90
    %v251 = vunpack.c.h.b16 %v90
    %v252 = vunpack.c.l.b16 %v91
    %v253 = vunpack.c.h.b16 %v91
    %v254 = vunpack.c.l.b16 %v92
    %v255 = vunpack.c.h.b16 %v92
    %v256 = vunpack.c.l.b16 %v93
    %v257 = vunpack.c.h.b16 %v93
    %v258 = vunpack.c.l.b16 %v94
    %v259 = vunpack.c.h.b16 %v94
    %v260 = vunpack.c.l.b16 %v95
    %v261 = vunpack.c.h.b16 %v95
    %v262 = vunpack.c.l.b16 %v96
    %v263 = vunpack.c.h.b16 %v96
    %v264 = vunpack.c.l.b16 %v97
    %v265 = vunpack.c.h.b16 %v97
    %v266 = vunpack.c.l.b16 %v98
    %v267 = vunpack.c.h.b16 %v98
    %v268 = vunpack.c.l.b16 %v99
    %v269 = vunpack.c.h.b16 %v99
    %v270 = vunpack.c.l.b16 %v100
    %v271 = vunpack.c.h.b16 %v100
    %v272 = vunpack.c.l.b16 %v101
    %v273 = vunpack.c.h.b16 %v101
    %v274 = vunpack.c.l.b16 %v102
    %v275 = vunpack.c.h.b16 %v102
    %v276 = vunpack.c.l.b16 %v103
    %v277 = vunpack.c.h.b16 %v103
    %v278 = vunpack.c.l.b16 %v104
    %v279 = vunpack.c.h.b16 %v104
    %v280 = vunpack.c.l.b16 %v105
    %v281 = vunpack.c.h.b16 %v105
    %v282 = vunpack.c.l.b16 %v106
    %v283 = vunpack.c.h.b16 %v106
    %v284 = vunpack.c.l.b16 %v107
    %v285 = vunpack.c.h.b16 %v107
    %v286 = vunpack.c.l.b16 %v108
    %v287 = vunpack.c.h.b16 %v108
    %v288 = vunpack.c.l.b16 %v109
    %v289 = vunpack.c.h.b16 %v109
    %v290 = vunpack.c.l.b16 %v110
    %v291 = vunpack.c.h.b16 %v110
    %v292 = vunpack.c.l.b16 %v111
    %v293 = vunpack.c.h.b16 %v111
    %v294 = vunpack.c.l.b16 %v112
    %v295 = vunpack.c.h.b16 %v112
    %v296 = vunpack.c.l.b16 %v113
    %v297 = vunpack.c.h.b16 %v113
    %v298 = vunpack.c.l.b16 %v114
    %v299 = vunpack.c.h.b16 %v114
    %v300 = vunpack.c.l.b16 %v115
    %v301 = vunpack.c.h.b16 %v115
    %v302 = vunpack.c.l.b16 %v116
    %v303 = vunpack.c.h.b16 %v116
    %v304 = vunpack.c.l.b16 %v117
    %v305 = vunpack.c.h.b16 %v117
    %v306 = vunpack.c.l.b16 %v118
    %v307 = vunpack.c.h.b16 %v118
    %v308 = vunpack.c.l.b16 %v119
    %v309 = vunpack.c.h.b16 %v119
    %v310 = vunpack.c.l.b16 %v120
    %v311 = vunpack.c.h.b16 %v120
    %v312 = vunpack.c.l.b16 %v121
    %v313 = vunpack.c.h.b16 %v121
    %v314 = vunpack.c.l.b16 %v122
    %v315 = vunpack.c.h.b16 %v122
    %v316 = vunpack.c.l.b16 %v123
    %v317 = vunpack.c.h.b16 %v123
    %v318 = vunpack.c.l.b16 %v124
    %v319 = vunpack.c.h.b16 %v124
    %v320 = vunpack.c.l.b16 %v125
    %v321 = vunpack.c.h.b16 %v125
    %v322 = vunpack.c.l.b16 %v126
    %v323 = vunpack.c.h.b16 %v126
    %v324 = vunpack.c.l.b16 %v127
    %v325 = vunpack.c.h.b16 %v127
    %v326 = vunpack.c.l.b16 %v128
    %v327 = vunpack.c.h.b16 %v128
    %v328 = vunpack.c.l.b16 %v129
    %v329 = vunpack.c.h.b16 %v129
    %v330 = vunpack.c.l.b16 %v130
    %v331 = vunpack.c.h.b16 %v130
    %v332 = vunpack.c.l.b16 %v131
    %v333 = vunpack.c.h.b16 %v131
    %v334 = vunpack.c.l.b16 %v132
    %v335 = vunpack.c.h.b16 %v132
    %v336 = vunpack.c.l.b16 %v133
    %v337 = vunpack.c.h.b16 %v133
    %v338 = vunpack.c.l.b16 %v134
    %v339 = vunpack.c.h.b16 %v134
    %v340 = vunpack.c.l.b16 %v135
    %v341 = vunpack.c.h.b16 %v135
    %v342 = vpack.c.b16 %v216, %v214
    %v343 = vpack.c.b16 %v217, %v215
    %v344 = vpack.c.b16 %v220, %v218
    %v345 = vpack.c.b16 %v221, %v219
    %v346 = vpack.c.b16 %v224, %v222
    %v347 = vpack.c.b16 %v225, %v223
    %v348 = vpack.c.b16 %v228, %v226
    %v349 = vpack.c.b16 %v229, %v227
    %v350 = vpack.c.b16 %v232, %v230
    %v351 = vpack.c.b16 %v233, %v231
    %v352 = vpack.c.b16 %v236, %v234
    %v353 = vpack.c.b16 %v237, %v235
    %v354 = vpack.c.b16 %v240, %v238
    %v355 = vpack.c.b16 %v241, %v239
    %v356 = vpack.c.b16 %v244, %v242
    %v357 = vpack.c.b16 %v245, %v243
    %v358 = vpack.c.b16 %v248, %v246
    %v359 = vpack.c.b16 %v249, %v247
    %v360 = vpack.c.b16 %v252, %v250
    %v361 = vpack.c.b16 %v253, %v251
    %v362 = vpack.c.b16 %v256, %v254
    %v363 = vpack.c.b16 %v257, %v255
    %v364 = vpack.c.b16 %v260, %v258
    %v365 = vpack.c.b16 %v261, %v259
    %v366 = vpack.c.b16 %v264, %v262
    %v367 = vpack.c.b16 %v265, %v263
    %v368 = vpack.c.b16 %v268, %v266
    %v369 = vpack.c.b16 %v269, %v267
    %v370 = vpack.c.b16 %v272, %v270
    %v371 = vpack.c.b16 %v273, %v271
    %v372 = vpack.c.b16 %v276, %v274
    %v373 = vpack.c.b16 %v277, %v275
    %v374 = vpack.c.b16 %v280, %v278
    %v375 = vpack.c.b16 %v281, %v279
    %v376 = vpack.c.b16 %v284, %v282
    %v377 = vpack.c.b16 %v285, %v283
    %v378 = vpack.c.b16 %v288, %v286
    %v379 = vpack.c.b16 %v289, %v287
    %v380 = vpack.c.b16 %v292, %v290
    %v381 = vpack.c.b16 %v293, %v291
    %v382 = vpack.c.b16 %v296, %v294
    %v383 = vpack.c.b16 %v297, %v295
    %v384 = vpack.c.b16 %v300, %v298
    %v385 = vpack.c.b16 %v301, %v299
    %v386 = vpack.c.b16 %v304, %v302
    %v387 = vpack.c.b16 %v305, %v303
    %v388 = vpack.c.b16 %v308, %v306
    %v389 = vpack.c.b16 %v309, %v307
    %v390 = vpack.c.b16 %v312, %v310
    %v391 = vpack.c.b16 %v313, %v311
    %v392 = vpack.c.b16 %v316, %v314
    %v393 = vpack.c.b16 %v317, %v315
    %v394 = vpack.c.b16 %v320, %v318
    %v395 = vpack.c.b16 %v321, %v319
    %v396 = vpack.c.b16 %v324, %v322
    %v397 = vpack.c.b16 %v325, %v323
    %v398 = vpack.c.b16 %v328, %v326
    %v399 = vpack.c.b16 %v329, %v327
    %v400 = vpack.c.b16 %v332, %v330
    %v401 = vpack.c.b16 %v333, %v331
    %v402 = vpack.c.b16 %v336, %v334
    %v403 = vpack.c.b16 %v337, %v335
    %v404 = vpack.c.b16 %v340, %v338
    %v405 = vpack.c.b16 %v341, %v339
    %470 = vmatprep.subr.bf16.mxu0 %v343
    %471 = vmatpush1.bf16.msra.mxu0 %v342
    %472 = vmatprep.subr.bf16.mxu0 %v345
    %473 = vmatpush1.bf16.msra.mxu0 %v344
    %474 = vmatprep.subr.bf16.mxu0 %v347
    %475 = vmatpush1.bf16.msra.mxu0 %v346
    %476 = vmatprep.subr.bf16.mxu0 %v349
    %477 = vmatpush1.bf16.msra.mxu0 %v348
    %478 = vmatprep.subr.bf16.mxu0 %v351
    %479 = vmatpush1.bf16.msra.mxu0 %v350
    %480 = vmatprep.subr.bf16.mxu0 %v353
    %481 = vmatpush1.bf16.msra.mxu0 %v352
    %482 = vmatprep.subr.bf16.mxu0 %v355
    %483 = vmatpush1.bf16.msra.mxu0 %v354
    %484 = vmatprep.subr.bf16.mxu0 %v357
    %485 = vmatpush1.bf16.msra.mxu0 %v356
    %486 = vmatprep.subr.bf16.mxu0 %v359
    %487 = vmatpush1.bf16.msra.mxu0 %v358
    %488 = vmatprep.subr.bf16.mxu0 %v361
    %489 = vmatpush1.bf16.msra.mxu0 %v360
    %490 = vmatprep.subr.bf16.mxu0 %v363
    %491 = vmatpush1.bf16.msra.mxu0 %v362
    %492 = vmatprep.subr.bf16.mxu0 %v365
    %493 = vmatpush1.bf16.msra.mxu0 %v364
    %494 = vmatprep.subr.bf16.mxu0 %v367
    %495 = vmatpush1.bf16.msra.mxu0 %v366
    %496 = vmatprep.subr.bf16.mxu0 %v369
    %497 = vmatpush1.bf16.msra.mxu0 %v368
    %498 = vmatprep.subr.bf16.mxu0 %v371
    %499 = vmatpush1.bf16.msra.mxu0 %v370
    %500 = vmatprep.subr.bf16.mxu0 %v373
    %501 = vmatpush1.bf16.msra.mxu0 %v372
    %502 = vmatprep.mubr.bf16.mxu0 %v143
    %503 = vmatmul.mubr.bf16.gmra.mrb[0].mxu0 %v142
    %v504 = vpop.f32.mrb[0].mxu0
    %v505 = vadd.f32 0.0, %v504
    %v506 = vpop.f32.mrb[0].mxu0
    %v507 = vadd.f32 0.0, %v506
    %v508 = vpop.f32.mrb[0].mxu0
    %v509 = vpop.f32.mrb[0].mxu0
    %510 = vdwg.mxu0
    %511 = vmatprep.subr.bf16.mxu0 %v375
    %512 = vmatpush1.bf16.msra.mxu0 %v374
    %513 = vmatprep.subr.bf16.mxu0 %v377
    %514 = vmatpush1.bf16.msra.mxu0 %v376
    %515 = vmatprep.subr.bf16.mxu0 %v379
    %516 = vmatpush1.bf16.msra.mxu0 %v378
    %517 = vmatprep.subr.bf16.mxu0 %v381
    %518 = vmatpush1.bf16.msra.mxu0 %v380
    %519 = vmatprep.subr.bf16.mxu0 %v383
    %520 = vmatpush1.bf16.msra.mxu0 %v382
    %521 = vmatprep.subr.bf16.mxu0 %v385
    %522 = vmatpush1.bf16.msra.mxu0 %v384
    %523 = vmatprep.subr.bf16.mxu0 %v387
    %524 = vmatpush1.bf16.msra.mxu0 %v386
    %525 = vmatprep.subr.bf16.mxu0 %v389
    %526 = vmatpush1.bf16.msra.mxu0 %v388
    %527 = vmatprep.subr.bf16.mxu0 %v391
    %528 = vmatpush1.bf16.msra.mxu0 %v390
    %529 = vmatprep.subr.bf16.mxu0 %v393
    %530 = vmatpush1.bf16.msra.mxu0 %v392
    %531 = vmatprep.subr.bf16.mxu0 %v395
    %532 = vmatpush1.bf16.msra.mxu0 %v394
    %533 = vmatprep.subr.bf16.mxu0 %v397
    %534 = vmatpush1.bf16.msra.mxu0 %v396
    %535 = vmatprep.subr.bf16.mxu0 %v399
    %536 = vmatpush1.bf16.msra.mxu0 %v398
    %537 = vmatprep.subr.bf16.mxu0 %v401
    %538 = vmatpush1.bf16.msra.mxu0 %v400
    %539 = vmatprep.subr.bf16.mxu0 %v403
    %540 = vmatpush1.bf16.msra.mxu0 %v402
    %541 = vmatprep.subr.bf16.mxu0 %v405
    %542 = vmatpush1.bf16.msra.mxu0 %v404
    %543 = vmatprep.mubr.bf16.mxu0 %v145
    %544 = vmatmul.mubr.bf16.gmra.mrb[0].mxu0 %v144
    %v545 = vpop.f32.mrb[0].mxu0
    %v546 = vadd.f32 %v505, %v545
    %v547 = vpop.f32.mrb[0].mxu0
    %v548 = vadd.f32 %v507, %v547
    %v549 = vpop.f32.mrb[0].mxu0
    %v550 = vpop.f32.mrb[0].mxu0
    %551 = vdwg.mxu0
    %v552 = vadd.f32 %v68, %v546
    %v553 = vadd.f32 %v69, %v548
    %554 = vst [vmem:[#allocation2] sm:$0xff] %v552
    %555 = vst [vmem:[#allocation2 + $0x8] sm:$0xff] %v553
    // Predicated region
    $region42: #{cvae_forward.2} parent=1 // pred_check
      %p556 = pneg %p62
    $region43: #{cvae_forward.2} parent=1 // pred_check_branch
      %558 = sbr.rel (%p556) target = $region45
    $region44: #{cvae_forward.2} parent=1 // pred_region
      %v559 = vld [vmem:[#allocation2] sm:$0xff]
      %v560 = vld [vmem:[#allocation2 + $0x8] sm:$0xff]
      %v561 = vld [vmem:[%s2] sm:$0x3]
      %v563 = vlaneseq
      %v564 = vshrl.u32 %v563, 7
      %v565 = vsub.s32 0, %v564
      %v566 = vrot.slane %v561, %v565
      %v567 = vlaneseq
      %v568 = vshrl.u32 %v567, 7
      %v569 = vsub.s32 1, %v568
      %v570 = vrot.slane %v561, %v569
      %v573 = vadd.f32 %v559, %v566
      %v574 = vadd.f32 %v560, %v570
      %v575 = vmax.f32 %v573, 0.0
      %v576 = vmax.f32 %v574, 0.0
      %v577 = vpack.c.bf16 %v575, %v575
      %v578 = vpack.c.bf16 %v576, %v576
      %v579 = vld [vmem:[#allocation7] sm:$0xff]
      %v580 = vld [vmem:[#allocation7 + $0x8] sm:$0xff]
      %v581 = vld [vmem:[#allocation7 + $0x10] sm:$0xff]
      %v582 = vld [vmem:[#allocation7 + $0x18] sm:$0xff]
      %v583 = vld [vmem:[#allocation7 + $0x20] sm:$0xff]
      %v584 = vld [vmem:[#allocation7 + $0x28] sm:$0xff]
      %v585 = vld [vmem:[#allocation7 + $0x30] sm:$0xff]
      %v586 = vld [vmem:[#allocation7 + $0x38] sm:$0xff]
      %v587 = vld [vmem:[#allocation7 + $0x40] sm:$0xff]
      %v588 = vld [vmem:[#allocation7 + $0x48] sm:$0xff]
      %v589 = vld [vmem:[#allocation7 + $0x50] sm:$0xff]
      %v590 = vld [vmem:[#allocation7 + $0x58] sm:$0xff]
      %v591 = vld [vmem:[#allocation7 + $0x60] sm:$0xff]
      %v592 = vld [vmem:[#allocation7 + $0x68] sm:$0xff]
      %v593 = vld [vmem:[#allocation7 + $0x70] sm:$0xff]
      %v594 = vld [vmem:[#allocation7 + $0x78] sm:$0xff]
      %v595 = vld [vmem:[#allocation7 + $0x80] sm:$0xff]
      %v596 = vld [vmem:[#allocation7 + $0x88] sm:$0xff]
      %v597 = vld [vmem:[#allocation7 + $0x90] sm:$0xff]
      %v598 = vld [vmem:[#allocation7 + $0x98] sm:$0xff]
      %v599 = vld [vmem:[#allocation7 + $0xa0] sm:$0xff]
      %v600 = vld [vmem:[#allocation7 + $0xa8] sm:$0xff]
      %v601 = vld [vmem:[#allocation7 + $0xb0] sm:$0xff]
      %v602 = vld [vmem:[#allocation7 + $0xb8] sm:$0xff]
      %v603 = vld [vmem:[#allocation7 + $0xc0] sm:$0xff]
      %v604 = vld [vmem:[#allocation7 + $0xc8] sm:$0xff]
      %v605 = vld [vmem:[#allocation7 + $0xd0] sm:$0xff]
      %v606 = vld [vmem:[#allocation7 + $0xd8] sm:$0xff]
      %v607 = vld [vmem:[#allocation7 + $0xe0] sm:$0xff]
      %v608 = vld [vmem:[#allocation7 + $0xe8] sm:$0xff]
      %v609 = vld [vmem:[#allocation7 + $0xf0] sm:$0xff]
      %v610 = vld [vmem:[#allocation7 + $0xf8] sm:$0xff]
      %v611 = vld [vmem:[%s4] sm:$0x3]
      %v613 = vlaneseq
      %v614 = vshrl.u32 %v613, 7
      %v615 = vsub.s32 0, %v614
      %v616 = vrot.slane %v611, %v615
      %v617 = vlaneseq
      %v618 = vshrl.u32 %v617, 7
      %v619 = vsub.s32 1, %v618
      %v620 = vrot.slane %v611, %v619
      %v655 = vunpack.c.l.b16 %v579
      %v656 = vunpack.c.h.b16 %v579
      %v657 = vunpack.c.l.b16 %v580
      %v658 = vunpack.c.h.b16 %v580
      %v659 = vunpack.c.l.b16 %v581
      %v660 = vunpack.c.h.b16 %v581
      %v661 = vunpack.c.l.b16 %v582
      %v662 = vunpack.c.h.b16 %v582
      %v663 = vunpack.c.l.b16 %v583
      %v664 = vunpack.c.h.b16 %v583
      %v665 = vunpack.c.l.b16 %v584
      %v666 = vunpack.c.h.b16 %v584
      %v667 = vunpack.c.l.b16 %v585
      %v668 = vunpack.c.h.b16 %v585
      %v669 = vunpack.c.l.b16 %v586
      %v670 = vunpack.c.h.b16 %v586
      %v671 = vunpack.c.l.b16 %v587
      %v672 = vunpack.c.h.b16 %v587
      %v673 = vunpack.c.l.b16 %v588
      %v674 = vunpack.c.h.b16 %v588
      %v675 = vunpack.c.l.b16 %v589
      %v676 = vunpack.c.h.b16 %v589
      %v677 = vunpack.c.l.b16 %v590
      %v678 = vunpack.c.h.b16 %v590
      %v679 = vunpack.c.l.b16 %v591
      %v680 = vunpack.c.h.b16 %v591
      %v681 = vunpack.c.l.b16 %v592
      %v682 = vunpack.c.h.b16 %v592
      %v683 = vunpack.c.l.b16 %v593
      %v684 = vunpack.c.h.b16 %v593
      %v685 = vunpack.c.l.b16 %v594
      %v686 = vunpack.c.h.b16 %v594
      %v687 = vunpack.c.l.b16 %v595
      %v688 = vunpack.c.h.b16 %v595
      %v689 = vunpack.c.l.b16 %v596
      %v690 = vunpack.c.h.b16 %v596
      %v691 = vunpack.c.l.b16 %v597
      %v692 = vunpack.c.h.b16 %v597
      %v693 = vunpack.c.l.b16 %v598
      %v694 = vunpack.c.h.b16 %v598
      %v695 = vunpack.c.l.b16 %v599
      %v696 = vunpack.c.h.b16 %v599
      %v697 = vunpack.c.l.b16 %v600
      %v698 = vunpack.c.h.b16 %v600
      %v699 = vunpack.c.l.b16 %v601
      %v700 = vunpack.c.h.b16 %v601
      %v701 = vunpack.c.l.b16 %v602
      %v702 = vunpack.c.h.b16 %v602
      %v703 = vunpack.c.l.b16 %v603
      %v704 = vunpack.c.h.b16 %v603
      %v705 = vunpack.c.l.b16 %v604
      %v706 = vunpack.c.h.b16 %v604
      %v707 = vunpack.c.l.b16 %v605
      %v708 = vunpack.c.h.b16 %v605
      %v709 = vunpack.c.l.b16 %v606
      %v710 = vunpack.c.h.b16 %v606
      %v711 = vunpack.c.l.b16 %v607
      %v712 = vunpack.c.h.b16 %v607
      %v713 = vunpack.c.l.b16 %v608
      %v714 = vunpack.c.h.b16 %v608
      %v715 = vunpack.c.l.b16 %v609
      %v716 = vunpack.c.h.b16 %v609
      %v717 = vunpack.c.l.b16 %v610
      %v718 = vunpack.c.h.b16 %v610
      %v719 = vpack.c.b16 %v657, %v655
      %v720 = vpack.c.b16 %v658, %v656
      %v721 = vpack.c.b16 %v661, %v659
      %v722 = vpack.c.b16 %v662, %v660
      %v723 = vpack.c.b16 %v665, %v663
      %v724 = vpack.c.b16 %v666, %v664
      %v725 = vpack.c.b16 %v669, %v667
      %v726 = vpack.c.b16 %v670, %v668
      %v727 = vpack.c.b16 %v673, %v671
      %v728 = vpack.c.b16 %v674, %v672
      %v729 = vpack.c.b16 %v677, %v675
      %v730 = vpack.c.b16 %v678, %v676
      %v731 = vpack.c.b16 %v681, %v679
      %v732 = vpack.c.b16 %v682, %v680
      %v733 = vpack.c.b16 %v685, %v683
      %v734 = vpack.c.b16 %v686, %v684
      %v735 = vpack.c.b16 %v689, %v687
      %v736 = vpack.c.b16 %v690, %v688
      %v737 = vpack.c.b16 %v693, %v691
      %v738 = vpack.c.b16 %v694, %v692
      %v739 = vpack.c.b16 %v697, %v695
      %v740 = vpack.c.b16 %v698, %v696
      %v741 = vpack.c.b16 %v701, %v699
      %v742 = vpack.c.b16 %v702, %v700
      %v743 = vpack.c.b16 %v705, %v703
      %v744 = vpack.c.b16 %v706, %v704
      %v745 = vpack.c.b16 %v709, %v707
      %v746 = vpack.c.b16 %v710, %v708
      %v747 = vpack.c.b16 %v713, %v711
      %v748 = vpack.c.b16 %v714, %v712
      %v749 = vpack.c.b16 %v717, %v715
      %v750 = vpack.c.b16 %v718, %v716
      %783 = vmatprep.subr.bf16.mxu0 %v720
      %784 = vmatpush1.bf16.msra.mxu0 %v719
      %785 = vmatprep.subr.bf16.mxu0 %v722
      %786 = vmatpush1.bf16.msra.mxu0 %v721
      %787 = vmatprep.subr.bf16.mxu0 %v724
      %788 = vmatpush1.bf16.msra.mxu0 %v723
      %789 = vmatprep.subr.bf16.mxu0 %v726
      %790 = vmatpush1.bf16.msra.mxu0 %v725
      %791 = vmatprep.subr.bf16.mxu0 %v728
      %792 = vmatpush1.bf16.msra.mxu0 %v727
      %793 = vmatprep.subr.bf16.mxu0 %v730
      %794 = vmatpush1.bf16.msra.mxu0 %v729
      %795 = vmatprep.subr.bf16.mxu0 %v732
      %796 = vmatpush1.bf16.msra.mxu0 %v731
      %797 = vmatprep.subr.bf16.mxu0 %v734
      %798 = vmatpush1.bf16.msra.mxu0 %v733
      %799 = vmatprep.subr.bf16.mxu0 %v736
      %800 = vmatpush1.bf16.msra.mxu0 %v735
      %801 = vmatprep.subr.bf16.mxu0 %v738
      %802 = vmatpush1.bf16.msra.mxu0 %v737
      %803 = vmatprep.subr.bf16.mxu0 %v740
      %804 = vmatpush1.bf16.msra.mxu0 %v739
      %805 = vmatprep.subr.bf16.mxu0 %v742
      %806 = vmatpush1.bf16.msra.mxu0 %v741
      %807 = vmatprep.subr.bf16.mxu0 %v744
      %808 = vmatpush1.bf16.msra.mxu0 %v743
      %809 = vmatprep.subr.bf16.mxu0 %v746
      %810 = vmatpush1.bf16.msra.mxu0 %v745
      %811 = vmatprep.subr.bf16.mxu0 %v748
      %812 = vmatpush1.bf16.msra.mxu0 %v747
      %813 = vmatprep.subr.bf16.mxu0 %v750
      %814 = vmatpush1.bf16.msra.mxu0 %v749
      %815 = vmatprep.mubr.bf16.mxu0 %v578
      %816 = vmatmul.mubr.bf16.gmra.mrb[0].mxu0 %v577
      %v817 = vpop.f32.mrb[0].mxu0
      %v818 = vadd.f32 %v616, %v817
      %v819 = vpop.f32.mrb[0].mxu0
      %v820 = vadd.f32 %v620, %v819
      %v821 = vpop.f32.mrb[0].mxu0
      %v822 = vpop.f32.mrb[0].mxu0
      %823 = vdwg.mxu0
      %v824 = vmul.f32 %v820, 0.5
      %v825 = vmul.f32 %v824, 1.442695
      %v826 = vpow.pop %v825
      %v827 = vld [vmem:[%s5] sm:$0xff]
      %v828 = vmul.f32 %v826, %v827
      %v829 = vadd.f32 %v818, %v828
      %v830 = vpack.c.bf16 %v829, %v829
      %831 = vst [vmem:[%s6] sm:$0xf] %v830
    $region45: #{cvae_forward.2} parent=1 // pred_fallthru
      _
    // Predicated region
    $region46: #{cvae_forward.2} parent=1 // pred_check
      _
    $region47: #{cvae_forward.2} parent=1 // pred_check_branch
      %833 = sbr.rel (0) target = $region49
    $region48: #{cvae_forward.2} parent=1 // pred_region
      _
    $region49: #{cvae_forward.2} parent=1 // pred_fallthru
      _
    // Predicated region
    $region50: #{cvae_forward.2} parent=1 // pred_check
      _
    $region51: #{cvae_forward.2} parent=1 // pred_check_branch
      %835 = sbr.rel (0) target = $region53
    $region52: #{cvae_forward.2} parent=1 // pred_region
      _
    $region53: #{cvae_forward.2} parent=1 // pred_fallthru
      _
    %836 = vsyncpa [#allocation4], 1
    %837 = vsyncpa [#allocation6], 1

</llo_original>
